<compile_context>
chip_gen: v6e
topology: v6e:2x2x1
jax: 0.10.0
libtpu: 0.0.40
codegen_flags: <defaults>
</compile_context>

<pallas_src>
import jax
import jax.numpy as jnp
from jax.experimental import pallas as pl
from jax.experimental.pallas import tpu as pltpu

# ---- hyper-parameters (small synthetic sizes) -------------------------------
BATCH = 2
CIN = 3            # RGB images
H = W = 16
M = 32             # conv output channels ("M" arg of make_CCR_model)
BLOCK = 4          # number of part-pooling stripes ("block" arg)
CLASS_NUM = 10
SHARE_WEIGHT = False

assert H % BLOCK == 0, "H must be divisible by BLOCK for stripe part-pooling"

BHW = BATCH * H * W        # 512 im2col rows
K_TAPS = 9 * CIN           # 27 real im2col columns
K_PAD = 32                 # 27 taps + 1 bias column, zero-padded to 32
LANE = 128
OUT_LANES = BLOCK * LANE   # lane-dense logits slab width (4 * 128 = 512)
PB = BLOCK * BATCH         # pooled rows (8 -> one full sublane group)


# ---- Pallas kernel: conv-matmul + ReLU + pool-matmul + fused classifiers ----
def ccr_fused_kernel(vm_ref, patch_ref, cw_ref, pool_ref, fcw_ref, fcb_ref,
                     out_ref):
    # vm_ref   : [V] int32 SMEM   view -> model index (used only by index_maps)
    # patch_ref: [BHW, K_PAD]     im2col patches (+ constant-1 bias column)
    # cw_ref   : [K_PAD, M]       conv weights (+ bias row) for this view's model
    # pool_ref : [PB, BHW]        part mean-pooling matrix, rows ordered p*B + b
    # fcw_ref  : [M, BLOCK*128]   per-part classifier weights; part p occupies
    #                             columns [p*128, p*128 + CLASS_NUM)
    # fcb_ref  : [1, BLOCK*128]   per-part classifier bias, same column layout
    # out_ref  : [PB, BLOCK*128]  lane-dense logits slab
    del vm_ref  # consumed by the index_maps only

    # 3x3 conv (+ bias) as one MXU matmul, then ReLU.
    acc = jnp.dot(patch_ref[...], cw_ref[...],
                  preferred_element_type=jnp.float32)      # [BHW, M]
    acc = jnp.maximum(acc, 0.0)

    # Part mean-pooling as a matmul (keeps everything in the vmatmul stream).
    pooled = jnp.dot(pool_ref[...], acc,
                     preferred_element_type=jnp.float32)   # [PB, M]

    # All BLOCK classifiers fused into one lane-dense matmul + single bias add.
    logits = jnp.dot(pooled, fcw_ref[...],
                     preferred_element_type=jnp.float32)   # [PB, BLOCK*128]
    out_ref[...] = (logits + fcb_ref[...]).astype(out_ref.dtype)


# ---- wrapper-side layout plumbing (plain XLA, outside the kernel) -----------
def _im2col(x_nchw):
    """[B, Cin, H, W] -> lane-dense patch matrix [B*H*W, K_PAD]."""
    x = jnp.transpose(x_nchw, (0, 2, 3, 1)).astype(jnp.float32)   # NHWC
    xp = jnp.pad(x, ((0, 0), (1, 1), (1, 1), (0, 0)))             # pad=1
    cols = []
    for ky in range(3):
        for kx in range(3):
            cols.append(xp[:, ky:ky + H, kx:kx + W, :])           # [B,H,W,Cin]
    p = jnp.concatenate(cols, axis=-1).reshape(BHW, K_TAPS)       # tap-major
    ones = jnp.ones((BHW, 1), jnp.float32)                        # bias column
    zeros = jnp.zeros((BHW, K_PAD - K_TAPS - 1), jnp.float32)
    return jnp.concatenate([p, ones, zeros], axis=-1)             # [BHW, K_PAD]


def _pack_conv(params):
    """conv_w [3,3,Cin,M] + conv_b [1,M] -> padded [K_PAD, M] (bias in row 27)."""
    cw = params["conv_w"].reshape(K_TAPS, M)
    cb = params["conv_b"].reshape(1, M)
    pad = jnp.zeros((K_PAD - K_TAPS - 1, M), jnp.float32)
    return jnp.concatenate([cw, cb, pad], axis=0)


def _pack_fc(params):
    """fc_w [BLOCK,M,C], fc_b [BLOCK,1,C] -> ([M, BLOCK*128], [1, BLOCK*128])."""
    fw = jnp.pad(params["fc_w"], ((0, 0), (0, 0), (0, LANE - CLASS_NUM)))
    fwc = jnp.transpose(fw, (1, 0, 2)).reshape(M, OUT_LANES)
    fb = jnp.pad(params["fc_b"], ((0, 0), (0, 0), (0, LANE - CLASS_NUM)))
    fbc = fb.reshape(1, OUT_LANES)
    return fwc, fbc


def _pool_matrix():
    """[PB, BHW] averaging matrix: row p*B+b mean-pools stripe p of image b."""
    stripe = H // BLOCK
    inv = 1.0 / float(stripe * W)
    rows = []
    for p in range(BLOCK):
        for b in range(BATCH):
            r = jnp.zeros((BATCH, H, W), jnp.float32)
            r = r.at[b, p * stripe:(p + 1) * stripe, :].set(inv)
            rows.append(r.reshape(-1))
    return jnp.stack(rows, axis=0)


def ccr_fused_forward(params_1, params_2, patches, view_model):
    """patches: [V, BHW, K_PAD]; view_model: [V] int32 -> [V, B, BLOCK, C]."""
    V = patches.shape[0]
    cw = jnp.stack([_pack_conv(params_1), _pack_conv(params_2)], axis=0)
    fw1, fb1 = _pack_fc(params_1)
    fw2, fb2 = _pack_fc(params_2)
    fcw = jnp.stack([fw1, fw2], axis=0)            # [2, M, OUT_LANES]
    fcb = jnp.stack([fb1, fb2], axis=0)            # [2, 1, OUT_LANES]
    pool = _pool_matrix()                          # [PB, BHW]

    out = pl.pallas_call(
        ccr_fused_kernel,
        grid_spec=pltpu.PrefetchScalarGridSpec(
            num_scalar_prefetch=1,
            grid=(V,),
            in_specs=[
                pl.BlockSpec((None, BHW, K_PAD), lambda v, vm: (v, 0, 0)),
                pl.BlockSpec((None, K_PAD, M), lambda v, vm: (vm[v], 0, 0)),
                pl.BlockSpec((PB, BHW), lambda v, vm: (0, 0)),
                pl.BlockSpec((None, M, OUT_LANES), lambda v, vm: (vm[v], 0, 0)),
                pl.BlockSpec((None, 1, OUT_LANES), lambda v, vm: (vm[v], 0, 0)),
            ],
            out_specs=pl.BlockSpec((None, PB, OUT_LANES),
                                   lambda v, vm: (v, 0, 0)),
        ),
        out_shape=jax.ShapeDtypeStruct((V, PB, OUT_LANES), jnp.float32),
        compiler_params=pltpu.CompilerParams(
            dimension_semantics=("parallel",)),
    )(view_model, patches, cw, pool, fcw, fcb)

    # Select part p's column block for row-group p, slice classes, reorder.
    o = out.reshape(V, BLOCK, BATCH, BLOCK, LANE)[..., :CLASS_NUM]  # [V,P,B,P,C]
    diag = jnp.diagonal(o, axis1=1, axis2=3)                        # [V,B,C,P]
    return jnp.transpose(diag, (0, 1, 3, 2))                        # [V,B,P,C]


def three_view_net_forward(params_1, params_2, x1, x2, x3, x4=None):
    """Mirrors three_view_net.forward: model_1 on x1/x3, model_2 on x2/x4."""
    inputs = [x1, x2, x3] if x4 is None else [x1, x2, x3, x4]
    model_of = [0, 1, 0, 1]
    present = [(i, xi, model_of[i]) for i, xi in enumerate(inputs)
               if xi is not None]
    outs = [None] * len(inputs)
    if present:
        patches = jnp.stack([_im2col(xi) for _, xi, _ in present], axis=0)
        vm = jnp.array([m for _, _, m in present], dtype=jnp.int32)
        ys = ccr_fused_forward(params_1, params_2, patches, vm)
        for slot, (i, _, _) in enumerate(present):
            outs[i] = ys[slot]
    return tuple(outs)


# ---- plain-JAX reference (mirrors the PyTorch semantics, for verification) --
def ccr_forward_ref(params, x_nchw):
    x = jnp.transpose(x_nchw, (0, 2, 3, 1))
    xp = jnp.pad(x, ((0, 0), (1, 1), (1, 1), (0, 0)))
    acc = jnp.zeros((x.shape[0], H, W, M), jnp.float32)
    for ky in range(3):
        for kx in range(3):
            patch = xp[:, ky:ky + H, kx:kx + W, :]
            acc = acc + jnp.einsum("bhwc,cm->bhwm", patch,
                                   params["conv_w"][ky, kx])
    acc = jax.nn.relu(acc + params["conv_b"][0])
    stripe = H // BLOCK
    outs = []
    for p in range(BLOCK):
        feat = acc[:, p * stripe:(p + 1) * stripe].mean(axis=(1, 2))
        outs.append(feat @ params["fc_w"][p] + params["fc_b"][p, 0])
    return jnp.stack(outs, axis=1)                                  # [B,P,C]


def init_ccr_params(key):
    k1, k2, k3, k4 = jax.random.split(key, 4)
    return {
        "conv_w": 0.1 * jax.random.normal(k1, (3, 3, CIN, M), jnp.float32),
        "conv_b": 0.01 * jax.random.normal(k2, (1, M), jnp.float32),
        "fc_w": 0.1 * jax.random.normal(k3, (BLOCK, M, CLASS_NUM), jnp.float32),
        "fc_b": 0.01 * jax.random.normal(k4, (BLOCK, 1, CLASS_NUM), jnp.float32),
    }


if __name__ == "__main__":
    key = jax.random.PRNGKey(0)
    kp1, kp2, kx1, kx2, kx3 = jax.random.split(key, 5)

    params_1 = init_ccr_params(kp1)
    params_2 = params_1 if SHARE_WEIGHT else init_ccr_params(kp2)

    x1 = jax.random.normal(kx1, (BATCH, CIN, H, W), jnp.float32)
    x2 = jax.random.normal(kx2, (BATCH, CIN, H, W), jnp.float32)
    x3 = jax.random.normal(kx3, (BATCH, CIN, H, W), jnp.float32)

    y1, y2, y3 = three_view_net_forward(params_1, params_2, x1, x2, x3)
    jax.block_until_ready((y1, y2, y3))

    # correctness check against a plain-JAX reference
    r1 = ccr_forward_ref(params_1, x1)
    r2 = ccr_forward_ref(params_2, x2)
    r3 = ccr_forward_ref(params_1, x3)
    assert y1.shape == (BATCH, BLOCK, CLASS_NUM)
    assert jnp.allclose(y1, r1, atol=1e-2, rtol=1e-2)
    assert jnp.allclose(y2, r2, atol=1e-2, rtol=1e-2)
    assert jnp.allclose(y3, r3, atol=1e-2, rtol=1e-2)

    print("KERNEL_OK")
</pallas_src>

<mosaic_0001>
module attributes {stable_mosaic.version = 11 : i64} {
  func.func @ccr_fused_kernel(%arg0: i32, %arg1: memref<3xi32, #tpu.memory_space<smem>>, %arg2: memref<1x512x32xf32, #tpu.memory_space<vmem>>, %arg3: memref<1x32x32xf32, #tpu.memory_space<vmem>>, %arg4: memref<8x512xf32, #tpu.memory_space<vmem>>, %arg5: memref<1x32x512xf32, #tpu.memory_space<vmem>>, %arg6: memref<1x1x512xf32, #tpu.memory_space<vmem>>, %arg7: memref<1x8x512xf32, #tpu.memory_space<vmem>>) attributes {dimension_semantics = [#tpu.dimension_semantics<parallel>], iteration_bounds = array<i64: 3>, scalar_prefetch = 1 : i64, scratch_operands = 0 : i64, tpu.core_type = #tpu.core_type<tc>, window_params = [{transform_indices = @transform_0, window_bounds = array<i64: 1, 512, 32>}, {transform_indices = @transform_1, window_bounds = array<i64: 1, 32, 32>}, {pipeline_mode = #tpu.pipeline_mode<synchronous>, transform_indices = @transform_2, window_bounds = array<i64: 8, 512>}, {transform_indices = @transform_3, window_bounds = array<i64: 1, 32, 512>}, {transform_indices = @transform_4, window_bounds = array<i64: 1, 1, 512>}, {transform_indices = @transform_5, window_bounds = array<i64: 1, 8, 512>}]} {
    %c0 = arith.constant 0 : index
    %c0_0 = arith.constant 0 : index
    %c0_1 = arith.constant 0 : index
    %0 = vector.load %arg2[%c0, %c0_0, %c0_1] : memref<1x512x32xf32, #tpu.memory_space<vmem>>, vector<1x512x32xf32>
    %1 = vector.shape_cast %0 : vector<1x512x32xf32> to vector<512x32xf32>
    %c0_2 = arith.constant 0 : index
    %c0_3 = arith.constant 0 : index
    %c0_4 = arith.constant 0 : index
    %2 = vector.load %arg3[%c0_2, %c0_3, %c0_4] : memref<1x32x32xf32, #tpu.memory_space<vmem>>, vector<1x32x32xf32>
    %3 = vector.shape_cast %2 : vector<1x32x32xf32> to vector<32x32xf32>
    %cst = arith.constant dense<0.000000e+00> : vector<512x32xf32>
    %4 = tpu.matmul %1, %3, %cst {dimension_numbers = #tpu.dot_dimension_numbers<[1], [0], [0], [1], [0, 0, 1, 1], [], []>} : vector<512x32xf32>, vector<32x32xf32>, vector<512x32xf32> -> vector<512x32xf32>
    %cst_5 = arith.constant 0.000000e+00 : f32
    %5 = vector.broadcast %cst_5 : f32 to vector<512x32xf32>
    %6 = arith.maximumf %4, %5 : vector<512x32xf32>
    %c0_6 = arith.constant 0 : index
    %c0_7 = arith.constant 0 : index
    %7 = vector.load %arg4[%c0_6, %c0_7] : memref<8x512xf32, #tpu.memory_space<vmem>>, vector<8x512xf32>
    %cst_8 = arith.constant dense<0.000000e+00> : vector<8x32xf32>
    %8 = tpu.matmul %7, %6, %cst_8 {dimension_numbers = #tpu.dot_dimension_numbers<[1], [0], [0], [1], [0, 0, 1, 1], [], []>} : vector<8x512xf32>, vector<512x32xf32>, vector<8x32xf32> -> vector<8x32xf32>
    %c0_9 = arith.constant 0 : index
    %c0_10 = arith.constant 0 : index
    %c0_11 = arith.constant 0 : index
    %9 = vector.load %arg5[%c0_9, %c0_10, %c0_11] : memref<1x32x512xf32, #tpu.memory_space<vmem>>, vector<1x32x512xf32>
    %10 = vector.shape_cast %9 : vector<1x32x512xf32> to vector<32x512xf32>
    %cst_12 = arith.constant dense<0.000000e+00> : vector<8x512xf32>
    %11 = tpu.matmul %8, %10, %cst_12 {dimension_numbers = #tpu.dot_dimension_numbers<[1], [0], [0], [1], [0, 0, 1, 1], [], []>} : vector<8x32xf32>, vector<32x512xf32>, vector<8x512xf32> -> vector<8x512xf32>
    %c0_13 = arith.constant 0 : index
    %c0_14 = arith.constant 0 : index
    %c0_15 = arith.constant 0 : index
    %12 = vector.load %arg6[%c0_13, %c0_14, %c0_15] : memref<1x1x512xf32, #tpu.memory_space<vmem>>, vector<1x1x512xf32>
    %13 = vector.shape_cast %12 : vector<1x1x512xf32> to vector<1x512xf32>
    %14 = vector.broadcast %13 : vector<1x512xf32> to vector<8x512xf32>
    %15 = arith.addf %11, %14 : vector<8x512xf32>
    %c0_16 = arith.constant 0 : index
    %c0_17 = arith.constant 0 : index
    %c0_18 = arith.constant 0 : index
    %16 = vector.load %arg7[%c0_16, %c0_17, %c0_18] : memref<1x8x512xf32, #tpu.memory_space<vmem>>, vector<1x8x512xf32>
    %17 = vector.shape_cast %16 : vector<1x8x512xf32> to vector<8x512xf32>
    %18 = vector.shape_cast %15 : vector<8x512xf32> to vector<1x8x512xf32>
    tpu.vector_store %arg7[%c0_16, %c0_17, %c0_18], %18 {strides = array<i32>} : memref<1x8x512xf32, #tpu.memory_space<vmem>>, vector<1x8x512xf32>,
    return
  }
  func.func @transform_0(%arg0: i32, %arg1: memref<3xi32, #tpu.memory_space<smem>>) -> (i32, i32, i32) {
    %c0_i32 = arith.constant 0 : i32
    %c0_i32_0 = arith.constant 0 : i32
    %c0_i32_1 = arith.constant 0 : i32
    return %arg0, %c0_i32, %c0_i32_0 : i32, i32, i32
  }
  func.func @transform_1(%arg0: i32, %arg1: memref<3xi32, #tpu.memory_space<smem>>) -> (i32, i32, i32) {
    %0 = arith.index_cast %arg0 : i32 to index
    %1 = memref.load %arg1[%0] : memref<3xi32, #tpu.memory_space<smem>>
    %c0_i32 = arith.constant 0 : i32
    %c0_i32_0 = arith.constant 0 : i32
    %c0_i32_1 = arith.constant 0 : i32
    return %1, %c0_i32, %c0_i32_0 : i32, i32, i32
  }
  func.func @transform_2(%arg0: i32, %arg1: memref<3xi32, #tpu.memory_space<smem>>) -> (i32, i32) {
    %c0_i32 = arith.constant 0 : i32
    %c0_i32_0 = arith.constant 0 : i32
    %c0_i32_1 = arith.constant 0 : i32
    return %c0_i32, %c0_i32_0 : i32, i32
  }
  func.func @transform_3(%arg0: i32, %arg1: memref<3xi32, #tpu.memory_space<smem>>) -> (i32, i32, i32) {
    %0 = arith.index_cast %arg0 : i32 to index
    %1 = memref.load %arg1[%0] : memref<3xi32, #tpu.memory_space<smem>>
    %c0_i32 = arith.constant 0 : i32
    %c0_i32_0 = arith.constant 0 : i32
    %c0_i32_1 = arith.constant 0 : i32
    return %1, %c0_i32, %c0_i32_0 : i32, i32, i32
  }
  func.func @transform_4(%arg0: i32, %arg1: memref<3xi32, #tpu.memory_space<smem>>) -> (i32, i32, i32) {
    %0 = arith.index_cast %arg0 : i32 to index
    %1 = memref.load %arg1[%0] : memref<3xi32, #tpu.memory_space<smem>>
    %c0_i32 = arith.constant 0 : i32
    %c0_i32_0 = arith.constant 0 : i32
    %c0_i32_1 = arith.constant 0 : i32
    return %1, %c0_i32, %c0_i32_0 : i32, i32, i32
  }
  func.func @transform_5(%arg0: i32, %arg1: memref<3xi32, #tpu.memory_space<smem>>) -> (i32, i32, i32) {
    %c0_i32 = arith.constant 0 : i32
    %c0_i32_0 = arith.constant 0 : i32
    %c0_i32_1 = arith.constant 0 : i32
    return %arg0, %c0_i32, %c0_i32_0 : i32, i32, i32
  }
}

</mosaic_0001>

<llo_original>
// kernel: tpu_custom_call.1
$region0: #{tpu_custom_call.1}
  #allocation0 [shape = 'u32[]', space=smem, size = 0x4, offset = 0x4, fixed_abs, tag = 'smem constant byte address 0x4 - core index']
  #allocation1 [shape = 'u32[144,128]{1,0:T(1,128)}', space=vmem, size = 0x12000, scoped, tag = 'internal scratch']
  #allocation2 [shape = 's32[1]{0}', space=sflag, size = 0x4, scoped, tag = 'scoped memory for tpu_custom_call.1']
  #allocation3 [shape = 'u8[512]{0}', space=smem, size = 0x200, scoped, tag = 'prefetched SMEM operand 0']
  %s0 = inlined_call_operand.vmem [shape: s32[3], index: 0, kind: input, shape index: {}]
  %s1 = inlined_call_operand.vmem [shape: f32[3,512,32], index: 1, kind: input, shape index: {}]
  %s2 = inlined_call_operand.vmem [shape: f32[2,32,32], index: 2, kind: input, shape index: {}]
  %s3 = inlined_call_operand.vmem [shape: f32[8,512], index: 3, kind: input, shape index: {}]
  %s4 = inlined_call_operand.vmem [shape: f32[2,32,512], index: 4, kind: input, shape index: {}]
  %s5 = inlined_call_operand.vmem [shape: f32[2,1,512], index: 5, kind: input, shape index: {}]
  %s6 = inlined_call_operand.hbm [shape: f32[3,8,512], index: 6, kind: output, shape index: {}]
  %s7 = sld [smem:[#allocation0]]
  $region53: #{tpu_custom_call.1} parent=0
    _
  %s9 = ssub.s32 1, %s7
  %s10 = scalar_select 0, %s9, %s7
  %s11 = sshll.u32 %s0, 4
  %s12 = int_to_ptr.vmem [resolvable:$true] %s11
  %14 = dma.vmem_to_smem %s12, 16, [#allocation3], [#allocation2]
  %15 = dma.done [#allocation2], 16
  %16 = sfence
  $region1: #{tpu_custom_call.1} parent=0
    #allocation4 [shape = 'u8[32768]{0}', space=vmem, size = 0x8000, scoped, tag = 'output window, operand 0']
    #allocation5 [shape = 's32[2]{0}', space=sflag, size = 0x8, scoped, tag = 'scoped memory for tpu_custom_call.1']
    %17 = vsyncpa [#allocation5], 0
    %s18 = scalar_lea.sflag [#allocation5], 1
    %19 = vsyncpa %s18, 0
    loop: start=0, step=1, limit=5
    $region2: #{tpu_custom_call.1} parent=1 // loop_pre_header
      _
    $region3: #{tpu_custom_call.1} parent=1 // loop_header
      %s21 = sphi 0, %s25
      %p22 = scmp.ge.s32.totalorder %s21, 5
      %s31 = sphi 0, %s33
      %s34 = sphi 0, %s31
      %s35 = sphi 0, %s34
      %s51 = sphi 0, %s35
      %s59 = sphi 0, %s61
      %s62 = sphi 0, %s59
      %s63 = sphi 0, %s62
      %s79 = sphi 0, %s63
      %s83 = sphi 0, %s83
      %s85 = sphi 0, %s83
      %s86 = sphi 0, %s85
      %s100 = sphi 0, %s86
      %s108 = sphi 0, %s110
      %s111 = sphi 0, %s108
      %s112 = sphi 0, %s111
      %s128 = sphi 0, %s112
      %s136 = sphi 0, %s138
      %s139 = sphi 0, %s136
      %s140 = sphi 0, %s139
      %s156 = sphi 0, %s140
      %s162 = sphi 0, %s164
      %s165 = sphi 0, %s162
      %s166 = sphi 0, %s165
      %s182 = sphi 0, %s166
    $region4: #{tpu_custom_call.1} parent=1 // loop_header_branch
      %24 = sbr.rel (%p22) target = $region8
    $region5: #{tpu_custom_call.1} parent=1 // loop_body
      %s26 = ssub.s32 %s21, 1
      %s27 = ssub.s32 %s21, 2
      %s28 = sadd.s32 %s21, 1
      %s29 = ssub.s32 %s21, %s28
      %p30 = scmp.eq.s32.totalorder %s29, 0
      %s32 = sadd.s32 %s31, 1
      %s33 = scalar_select %p30, %s31, %s32
      %p36 = pneg %p30
      %p37 = scmp.eq.s32.totalorder %s21, 2
      %p38 = por %p36, %p37
      %p39 = scmp.ne.s32.totalorder %s31, %s34
      %p40 = scmp.eq.s32.totalorder %s21, 0
      %p41 = por %p39, %p40
      %p42 = scmp.ne.s32.totalorder %s31, %s34
      %p43 = scmp.eq.s32.totalorder %s26, 2
      %p44 = por %p42, %p43
      %p45 = scmp.ne.s32.totalorder %s34, %s35
      %p46 = scmp.eq.s32.totalorder %s26, 0
      %p47 = por %p45, %p46
      %p48 = scmp.ne.s32.totalorder %s34, %s35
      %p49 = scmp.eq.s32.totalorder %s27, 2
      %p50 = por %p48, %p49
      %p52 = scmp.ne.s32.totalorder %s35, %s51
      %p53 = scmp.eq.s32.totalorder %s27, 0
      %p54 = por %p52, %p53
      %s55 = sld [smem:[#allocation3 + %s21]]
      %s56 = sld [smem:[#allocation3 + %s28]]
      %s57 = ssub.s32 %s55, %s56
      %p58 = scmp.eq.s32.totalorder %s57, 0
      %s60 = sadd.s32 %s59, 1
      %s61 = scalar_select %p58, %s59, %s60
      %p64 = pneg %p58
      %p65 = scmp.eq.s32.totalorder %s21, 2
      %p66 = por %p64, %p65
      %p67 = scmp.ne.s32.totalorder %s59, %s62
      %p68 = scmp.eq.s32.totalorder %s21, 0
      %p69 = por %p67, %p68
      %p70 = scmp.ne.s32.totalorder %s59, %s62
      %p71 = scmp.eq.s32.totalorder %s26, 2
      %p72 = por %p70, %p71
      %p73 = scmp.ne.s32.totalorder %s62, %s63
      %p74 = scmp.eq.s32.totalorder %s26, 0
      %p75 = por %p73, %p74
      %p76 = scmp.ne.s32.totalorder %s62, %s63
      %p77 = scmp.eq.s32.totalorder %s27, 2
      %p78 = por %p76, %p77
      %p80 = scmp.ne.s32.totalorder %s63, %s79
      %p81 = scmp.eq.s32.totalorder %s27, 0
      %p82 = por %p80, %p81
      %s84 = sadd.s32 %s83, 1
      %p87 = scmp.eq.s32.totalorder %s21, 2
      %p88 = scmp.ne.s32.totalorder %s83, %s85
      %p89 = scmp.eq.s32.totalorder %s21, 0
      %p90 = por %p88, %p89
      %p91 = scmp.ne.s32.totalorder %s83, %s85
      %p92 = scmp.eq.s32.totalorder %s26, 2
      %p93 = por %p91, %p92
      %p94 = scmp.ne.s32.totalorder %s85, %s86
      %p95 = scmp.eq.s32.totalorder %s26, 0
      %p96 = por %p94, %p95
      %p97 = scmp.ne.s32.totalorder %s85, %s86
      %p98 = scmp.eq.s32.totalorder %s27, 2
      %p99 = por %p97, %p98
      %p101 = scmp.ne.s32.totalorder %s86, %s100
      %p102 = scmp.eq.s32.totalorder %s27, 0
      %p103 = por %p101, %p102
      %s104 = sld [smem:[#allocation3 + %s21]]
      %s105 = sld [smem:[#allocation3 + %s28]]
      %s106 = ssub.s32 %s104, %s105
      %p107 = scmp.eq.s32.totalorder %s106, 0
      %s109 = sadd.s32 %s108, 1
      %s110 = scalar_select %p107, %s108, %s109
      %p113 = pneg %p107
      %p114 = scmp.eq.s32.totalorder %s21, 2
      %p115 = por %p113, %p114
      %p116 = scmp.ne.s32.totalorder %s108, %s111
      %p117 = scmp.eq.s32.totalorder %s21, 0
      %p118 = por %p116, %p117
      %p119 = scmp.ne.s32.totalorder %s108, %s111
      %p120 = scmp.eq.s32.totalorder %s26, 2
      %p121 = por %p119, %p120
      %p122 = scmp.ne.s32.totalorder %s111, %s112
      %p123 = scmp.eq.s32.totalorder %s26, 0
      %p124 = por %p122, %p123
      %p125 = scmp.ne.s32.totalorder %s111, %s112
      %p126 = scmp.eq.s32.totalorder %s27, 2
      %p127 = por %p125, %p126
      %p129 = scmp.ne.s32.totalorder %s112, %s128
      %p130 = scmp.eq.s32.totalorder %s27, 0
      %p131 = por %p129, %p130
      %s132 = sld [smem:[#allocation3 + %s21]]
      %s133 = sld [smem:[#allocation3 + %s28]]
      %s134 = ssub.s32 %s132, %s133
      %p135 = scmp.eq.s32.totalorder %s134, 0
      %s137 = sadd.s32 %s136, 1
      %s138 = scalar_select %p135, %s136, %s137
      %p141 = pneg %p135
      %p142 = scmp.eq.s32.totalorder %s21, 2
      %p143 = por %p141, %p142
      %p144 = scmp.ne.s32.totalorder %s136, %s139
      %p145 = scmp.eq.s32.totalorder %s21, 0
      %p146 = por %p144, %p145
      %p147 = scmp.ne.s32.totalorder %s136, %s139
      %p148 = scmp.eq.s32.totalorder %s26, 2
      %p149 = por %p147, %p148
      %p150 = scmp.ne.s32.totalorder %s139, %s140
      %p151 = scmp.eq.s32.totalorder %s26, 0
      %p152 = por %p150, %p151
      %p153 = scmp.ne.s32.totalorder %s139, %s140
      %p154 = scmp.eq.s32.totalorder %s27, 2
      %p155 = por %p153, %p154
      %p157 = scmp.ne.s32.totalorder %s140, %s156
      %p158 = scmp.eq.s32.totalorder %s27, 0
      %p159 = por %p157, %p158
      %s160 = ssub.s32 %s21, %s28
      %p161 = scmp.eq.s32.totalorder %s160, 0
      %s163 = sadd.s32 %s162, 1
      %s164 = scalar_select %p161, %s162, %s163
      %p167 = pneg %p161
      %p168 = scmp.eq.s32.totalorder %s21, 2
      %p169 = por %p167, %p168
      %p170 = scmp.ne.s32.totalorder %s162, %s165
      %p171 = scmp.eq.s32.totalorder %s21, 0
      %p172 = por %p170, %p171
      %p173 = scmp.ne.s32.totalorder %s162, %s165
      %p174 = scmp.eq.s32.totalorder %s26, 2
      %p175 = por %p173, %p174
      %p176 = scmp.ne.s32.totalorder %s165, %s166
      %p177 = scmp.eq.s32.totalorder %s26, 0
      %p178 = por %p176, %p177
      %p179 = scmp.ne.s32.totalorder %s165, %s166
      %p180 = scmp.eq.s32.totalorder %s27, 2
      %p181 = por %p179, %p180
      %p183 = scmp.ne.s32.totalorder %s166, %s182
      %p184 = scmp.eq.s32.totalorder %s27, 0
      %p185 = por %p183, %p184
      %p186 = scmp.le.s32.totalorder 1, %s21
      %p187 = scmp.lt.s32.totalorder %s21, 4
      %p188 = pnand %p186, %p187
      %p189 = pneg %p188
      // Predicated region
      $region9: #{tpu_custom_call.1} parent=5 // pred_check
        _
      $region10: #{tpu_custom_call.1} parent=5 // pred_check_branch
        %191 = sbr.rel (%p188) target = $region12
      $region11: #{tpu_custom_call.1} parent=5 // pred_region
        %s192 = ssub.s32 %s21, 1
        // Predicated region
        $region13: #{tpu_custom_call.1} parent=11 // pred_check
          %p193 = pneg %p96
        $region14: #{tpu_custom_call.1} parent=11 // pred_check_branch
          %195 = sbr.rel (%p193) target = $region16
        $region15: #{tpu_custom_call.1} parent=11 // pred_region
          _
        $region16: #{tpu_custom_call.1} parent=11 // pred_fallthru
          _
      $region12: #{tpu_custom_call.1} parent=5 // pred_fallthru
        _
      %p196 = scmp.lt.s32.totalorder %s21, 3
      // Predicated region
      $region17: #{tpu_custom_call.1} parent=5 // pred_check
        %p197 = pneg %p196
      $region18: #{tpu_custom_call.1} parent=5 // pred_check_branch
        %199 = sbr.rel (%p197) target = $region20
      $region19: #{tpu_custom_call.1} parent=5 // pred_region
        // Predicated region
        $region21: #{tpu_custom_call.1} parent=19 // pred_check
          %p200 = pneg %p41
        $region22: #{tpu_custom_call.1} parent=19 // pred_check_branch
          %202 = sbr.rel (%p200) target = $region24
        $region23: #{tpu_custom_call.1} parent=19 // pred_region
          %p203 = scmp.lt.s32.totalorder %s21, 2
          %s204 = scalar_select %p203, %s21, 2
          %s205 = smul.addr %s204, 64
          %s206 = smul.addr %s205, 8
          %s207 = scalar_lea.vmem %s1, %s206
        $region24: #{tpu_custom_call.1} parent=19 // pred_fallthru
          _
        // Predicated region
        $region25: #{tpu_custom_call.1} parent=19 // pred_check
          %p208 = pneg %p69
        $region26: #{tpu_custom_call.1} parent=19 // pred_check_branch
          %210 = sbr.rel (%p208) target = $region28
        $region27: #{tpu_custom_call.1} parent=19 // pred_region
          %s211 = sld [smem:[#allocation3 + %s21]]
          %p212 = scmp.lt.s32.totalorder %s211, 1
          %s213 = scalar_select %p212, %s211, 1
          %s214 = smul.addr %s213, 4
          %s215 = smul.addr %s214, 8
          %s216 = scalar_lea.vmem %s2, %s215
          %s217 = sld [smem:[#allocation3 + %s21]]
        $region28: #{tpu_custom_call.1} parent=19 // pred_fallthru
          _
        // Predicated region
        $region29: #{tpu_custom_call.1} parent=19 // pred_check
          %p218 = pneg %p118
        $region30: #{tpu_custom_call.1} parent=19 // pred_check_branch
          %220 = sbr.rel (%p218) target = $region32
        $region31: #{tpu_custom_call.1} parent=19 // pred_region
          %s221 = sld [smem:[#allocation3 + %s21]]
          %p222 = scmp.lt.s32.totalorder %s221, 1
          %s223 = scalar_select %p222, %s221, 1
          %s224 = smul.addr %s223, 16
          %s225 = smul.addr %s224, 8
          %s226 = scalar_lea.vmem %s4, %s225
          %s227 = sld [smem:[#allocation3 + %s21]]
        $region32: #{tpu_custom_call.1} parent=19 // pred_fallthru
          _
        // Predicated region
        $region33: #{tpu_custom_call.1} parent=19 // pred_check
          %p228 = pneg %p146
        $region34: #{tpu_custom_call.1} parent=19 // pred_check_branch
          %230 = sbr.rel (%p228) target = $region36
        $region35: #{tpu_custom_call.1} parent=19 // pred_region
          %s231 = sld [smem:[#allocation3 + %s21]]
          %p232 = scmp.lt.s32.totalorder %s231, 1
          %s233 = scalar_select %p232, %s231, 1
          %s234 = smul.addr %s233, 4
          %s235 = scalar_lea.vmem %s5, %s234
          %s236 = sld [smem:[#allocation3 + %s21]]
        $region36: #{tpu_custom_call.1} parent=19 // pred_fallthru
          _
      $region20: #{tpu_custom_call.1} parent=5 // pred_fallthru
        _
      %p237 = scmp.le.s32.totalorder 1, %s21
      %p238 = scmp.lt.s32.totalorder %s21, 4
      %p239 = pnand %p237, %p238
      %p240 = pneg %p239
      // Predicated region
      $region37: #{tpu_custom_call.1} parent=5 // pred_check
        _
      $region38: #{tpu_custom_call.1} parent=5 // pred_check_branch
        %242 = sbr.rel (%p239) target = $region40
      $region39: #{tpu_custom_call.1} parent=5 // pred_region
        %s243 = ssub.s32 %s21, 1
        %p244 = scmp.lt.s32.totalorder %s26, 2
        %s245 = scalar_select %p244, %s26, 2
        %s246 = smul.addr %s245, 64
        %s247 = smul.addr %s246, 8
        %s248 = scalar_lea.vmem %s1, %s247
        %p249 = pneg %p47
        %p250 = pneg %p44
        %s251 = sld [smem:[#allocation3 + %s26]]
        %p252 = scmp.lt.s32.totalorder %s251, 1
        %s253 = scalar_select %p252, %s251, 1
        %s254 = smul.addr %s253, 4
        %s255 = smul.addr %s254, 8
        %s256 = scalar_lea.vmem %s2, %s255
        %p257 = pneg %p75
        %p258 = pneg %p72
        %p259 = pneg %p96
        %p260 = pneg %p93
        %s261 = sld [smem:[#allocation3 + %s26]]
        %p262 = scmp.lt.s32.totalorder %s261, 1
        %s263 = scalar_select %p262, %s261, 1
        %s264 = smul.addr %s263, 16
        %s265 = smul.addr %s264, 8
        %s266 = scalar_lea.vmem %s4, %s265
        %p267 = pneg %p124
        %p268 = pneg %p121
        %s269 = sld [smem:[#allocation3 + %s26]]
        %p270 = scmp.lt.s32.totalorder %s269, 1
        %s271 = scalar_select %p270, %s269, 1
        %s272 = smul.addr %s271, 4
        %s273 = scalar_lea.vmem %s5, %s272
        %p274 = pneg %p152
        %p275 = pneg %p149
        %p276 = pneg %p178
        %p277 = pneg %p175
        %s278 = sand.u32 %s165, 1
        %s279 = scalar_lea.sflag [#allocation5], %s278
        %s280 = sand.u32 %s165, 1
        %s281 = smul.addr %s280, 32
        %s282 = scalar_lea.vmem [#allocation4], %s281
        %p283 = scmp.lt.s32.totalorder %s26, 2
        %s284 = scalar_select %p283, %s26, 2
        %s285 = smul.addr %s284, 64
        %s286 = smul.addr %s285, 8
        %s287 = scalar_lea.vmem %s1, %s286
        %s288 = sld [smem:[#allocation3 + %s26]]
        %p289 = scmp.lt.s32.totalorder %s288, 1
        %s290 = scalar_select %p289, %s288, 1
        %s291 = smul.addr %s290, 4
        %s292 = smul.addr %s291, 8
        %s293 = scalar_lea.vmem %s2, %s292
        %s294 = sld [smem:[#allocation3 + %s26]]
        %s295 = sld [smem:[#allocation3 + %s26]]
        %p296 = scmp.lt.s32.totalorder %s295, 1
        %s297 = scalar_select %p296, %s295, 1
        %s298 = smul.addr %s297, 16
        %s299 = smul.addr %s298, 8
        %s300 = scalar_lea.vmem %s4, %s299
        %s301 = sld [smem:[#allocation3 + %s26]]
        %s302 = sld [smem:[#allocation3 + %s26]]
        %p303 = scmp.lt.s32.totalorder %s302, 1
        %s304 = scalar_select %p303, %s302, 1
        %s305 = smul.addr %s304, 4
        %s306 = scalar_lea.vmem %s5, %s305
        %s307 = sld [smem:[#allocation3 + %s26]]
        %v308 = vld [vmem:[%s287] sm:$0xff]
        %v309 = vld [vmem:[%s287 + $0x8] sm:$0xff]
        %v310 = vld [vmem:[%s287 + $0x10] sm:$0xff]
        %v311 = vld [vmem:[%s287 + $0x18] sm:$0xff]
        %v312 = vld [vmem:[%s287 + $0x20] sm:$0xff]
        %v313 = vld [vmem:[%s287 + $0x28] sm:$0xff]
        %v314 = vld [vmem:[%s287 + $0x30] sm:$0xff]
        %v315 = vld [vmem:[%s287 + $0x38] sm:$0xff]
        %v316 = vld [vmem:[%s287 + $0x40] sm:$0xff]
        %v317 = vld [vmem:[%s287 + $0x48] sm:$0xff]
        %v318 = vld [vmem:[%s287 + $0x50] sm:$0xff]
        %v319 = vld [vmem:[%s287 + $0x58] sm:$0xff]
        %v320 = vld [vmem:[%s287 + $0x60] sm:$0xff]
        %v321 = vld [vmem:[%s287 + $0x68] sm:$0xff]
        %v322 = vld [vmem:[%s287 + $0x70] sm:$0xff]
        %v323 = vld [vmem:[%s287 + $0x78] sm:$0xff]
        %v324 = vld [vmem:[%s287 + $0x80] sm:$0xff]
        %v325 = vld [vmem:[%s287 + $0x88] sm:$0xff]
        %v326 = vld [vmem:[%s287 + $0x90] sm:$0xff]
        %v327 = vld [vmem:[%s287 + $0x98] sm:$0xff]
        %v328 = vld [vmem:[%s287 + $0xa0] sm:$0xff]
        %v329 = vld [vmem:[%s287 + $0xa8] sm:$0xff]
        %v330 = vld [vmem:[%s287 + $0xb0] sm:$0xff]
        %v331 = vld [vmem:[%s287 + $0xb8] sm:$0xff]
        %v332 = vld [vmem:[%s287 + $0xc0] sm:$0xff]
        %v333 = vld [vmem:[%s287 + $0xc8] sm:$0xff]
        %v334 = vld [vmem:[%s287 + $0xd0] sm:$0xff]
        %v335 = vld [vmem:[%s287 + $0xd8] sm:$0xff]
        %v336 = vld [vmem:[%s287 + $0xe0] sm:$0xff]
        %v337 = vld [vmem:[%s287 + $0xe8] sm:$0xff]
        %v338 = vld [vmem:[%s287 + $0xf0] sm:$0xff]
        %v339 = vld [vmem:[%s287 + $0xf8] sm:$0xff]
        %v340 = vld [vmem:[%s287 + $0x100] sm:$0xff]
        %v341 = vld [vmem:[%s287 + $0x108] sm:$0xff]
        %v342 = vld [vmem:[%s287 + $0x110] sm:$0xff]
        %v343 = vld [vmem:[%s287 + $0x118] sm:$0xff]
        %v344 = vld [vmem:[%s287 + $0x120] sm:$0xff]
        %v345 = vld [vmem:[%s287 + $0x128] sm:$0xff]
        %v346 = vld [vmem:[%s287 + $0x130] sm:$0xff]
        %v347 = vld [vmem:[%s287 + $0x138] sm:$0xff]
        %v348 = vld [vmem:[%s287 + $0x140] sm:$0xff]
        %v349 = vld [vmem:[%s287 + $0x148] sm:$0xff]
        %v350 = vld [vmem:[%s287 + $0x150] sm:$0xff]
        %v351 = vld [vmem:[%s287 + $0x158] sm:$0xff]
        %v352 = vld [vmem:[%s287 + $0x160] sm:$0xff]
        %v353 = vld [vmem:[%s287 + $0x168] sm:$0xff]
        %v354 = vld [vmem:[%s287 + $0x170] sm:$0xff]
        %v355 = vld [vmem:[%s287 + $0x178] sm:$0xff]
        %v356 = vld [vmem:[%s287 + $0x180] sm:$0xff]
        %v357 = vld [vmem:[%s287 + $0x188] sm:$0xff]
        %v358 = vld [vmem:[%s287 + $0x190] sm:$0xff]
        %v359 = vld [vmem:[%s287 + $0x198] sm:$0xff]
        %v360 = vld [vmem:[%s287 + $0x1a0] sm:$0xff]
        %v361 = vld [vmem:[%s287 + $0x1a8] sm:$0xff]
        %v362 = vld [vmem:[%s287 + $0x1b0] sm:$0xff]
        %v363 = vld [vmem:[%s287 + $0x1b8] sm:$0xff]
        %v364 = vld [vmem:[%s287 + $0x1c0] sm:$0xff]
        %v365 = vld [vmem:[%s287 + $0x1c8] sm:$0xff]
        %v366 = vld [vmem:[%s287 + $0x1d0] sm:$0xff]
        %v367 = vld [vmem:[%s287 + $0x1d8] sm:$0xff]
        %v368 = vld [vmem:[%s287 + $0x1e0] sm:$0xff]
        %v369 = vld [vmem:[%s287 + $0x1e8] sm:$0xff]
        %v370 = vld [vmem:[%s287 + $0x1f0] sm:$0xff]
        %v371 = vld [vmem:[%s287 + $0x1f8] sm:$0xff]
        %v372 = vld [vmem:[%s293] sm:$0xff]
        %v373 = vld [vmem:[%s293 + $0x8] sm:$0xff]
        %v374 = vld [vmem:[%s293 + $0x10] sm:$0xff]
        %v375 = vld [vmem:[%s293 + $0x18] sm:$0xff]
        %vm376 = vcmask 261120
        %v378 = vsel %vm376, %v308, 0
        %v381 = vsel %vm376, %v309, 0
        %v384 = vsel %vm376, %v310, 0
        %v387 = vsel %vm376, %v311, 0
        %v390 = vsel %vm376, %v312, 0
        %v393 = vsel %vm376, %v313, 0
        %v396 = vsel %vm376, %v314, 0
        %v399 = vsel %vm376, %v315, 0
        %v402 = vsel %vm376, %v316, 0
        %v405 = vsel %vm376, %v317, 0
        %v408 = vsel %vm376, %v318, 0
        %v411 = vsel %vm376, %v319, 0
        %v414 = vsel %vm376, %v320, 0
        %v417 = vsel %vm376, %v321, 0
        %v420 = vsel %vm376, %v322, 0
        %v423 = vsel %vm376, %v323, 0
        %v426 = vsel %vm376, %v324, 0
        %v429 = vsel %vm376, %v325, 0
        %v432 = vsel %vm376, %v326, 0
        %v435 = vsel %vm376, %v327, 0
        %v438 = vsel %vm376, %v328, 0
        %v441 = vsel %vm376, %v329, 0
        %v444 = vsel %vm376, %v330, 0
        %v447 = vsel %vm376, %v331, 0
        %v450 = vsel %vm376, %v332, 0
        %v453 = vsel %vm376, %v333, 0
        %v456 = vsel %vm376, %v334, 0
        %v459 = vsel %vm376, %v335, 0
        %v462 = vsel %vm376, %v336, 0
        %v465 = vsel %vm376, %v337, 0
        %v468 = vsel %vm376, %v338, 0
        %v471 = vsel %vm376, %v339, 0
        %v474 = vsel %vm376, %v340, 0
        %v477 = vsel %vm376, %v341, 0
        %v480 = vsel %vm376, %v342, 0
        %v483 = vsel %vm376, %v343, 0
        %v486 = vsel %vm376, %v344, 0
        %v489 = vsel %vm376, %v345, 0
        %v492 = vsel %vm376, %v346, 0
        %v495 = vsel %vm376, %v347, 0
        %v498 = vsel %vm376, %v348, 0
        %v501 = vsel %vm376, %v349, 0
        %v504 = vsel %vm376, %v350, 0
        %v507 = vsel %vm376, %v351, 0
        %v510 = vsel %vm376, %v352, 0
        %v513 = vsel %vm376, %v353, 0
        %v516 = vsel %vm376, %v354, 0
        %v519 = vsel %vm376, %v355, 0
        %v522 = vsel %vm376, %v356, 0
        %v525 = vsel %vm376, %v357, 0
        %v528 = vsel %vm376, %v358, 0
        %v531 = vsel %vm376, %v359, 0
        %v534 = vsel %vm376, %v360, 0
        %v537 = vsel %vm376, %v361, 0
        %v540 = vsel %vm376, %v362, 0
        %v543 = vsel %vm376, %v363, 0
        %v546 = vsel %vm376, %v364, 0
        %v549 = vsel %vm376, %v365, 0
        %v552 = vsel %vm376, %v366, 0
        %v555 = vsel %vm376, %v367, 0
        %v558 = vsel %vm376, %v368, 0
        %v561 = vsel %vm376, %v369, 0
        %v564 = vsel %vm376, %v370, 0
        %v567 = vsel %vm376, %v371, 0
        %569 = vmatprep.subr.mxu0 0.0
        %570 = vmatpush1.msra.mxu0 0.0
        %571 = vmatprep.subr.mxu0 0.0
        %572 = vmatpush1.msra.mxu0 0.0
        %573 = vmatprep.subr.mxu0 0.0
        %574 = vmatpush1.msra.mxu0 0.0
        %575 = vmatprep.subr.mxu0 0.0
        %576 = vmatpush1.msra.mxu0 0.0
        %577 = vmatprep.subr.mxu0 0.0
        %578 = vmatpush1.msra.mxu0 0.0
        %579 = vmatprep.subr.mxu0 0.0
        %580 = vmatpush1.msra.mxu0 0.0
        %581 = vmatprep.subr.mxu0 0.0
        %582 = vmatpush1.msra.mxu0 0.0
        %583 = vmatprep.subr.mxu0 0.0
        %584 = vmatpush1.msra.mxu0 0.0
        %585 = vmatprep.subr.mxu0 0.0
        %586 = vmatpush1.msra.mxu0 0.0
        %587 = vmatprep.subr.mxu0 0.0
        %588 = vmatpush1.msra.mxu0 0.0
        %589 = vmatprep.subr.mxu0 0.0
        %590 = vmatpush1.msra.mxu0 0.0
        %591 = vmatprep.subr.mxu0 0.0
        %592 = vmatpush1.msra.mxu0 0.0
        %593 = vmatprep.subr.mxu0 0.0
        %594 = vmatpush1.msra.mxu0 %v375
        %595 = vmatprep.subr.mxu0 0.0
        %596 = vmatpush1.msra.mxu0 %v374
        %597 = vmatprep.subr.mxu0 0.0
        %598 = vmatpush1.msra.mxu0 %v373
        %599 = vmatprep.subr.mxu0 0.0
        %600 = vmatpush1.msra.mxu0 %v372
        %601 = vmatprep.subr.mxu0 0.0
        %602 = vmatpush2.msra.mxu0 0.0
        %603 = vmatprep.subr.mxu0 0.0
        %604 = vmatpush2.msra.mxu0 0.0
        %605 = vmatprep.subr.mxu0 0.0
        %606 = vmatpush2.msra.mxu0 0.0
        %607 = vmatprep.subr.mxu0 0.0
        %608 = vmatpush2.msra.mxu0 0.0
        %609 = vmatprep.subr.mxu0 0.0
        %610 = vmatpush2.msra.mxu0 0.0
        %611 = vmatprep.subr.mxu0 0.0
        %612 = vmatpush2.msra.mxu0 0.0
        %613 = vmatprep.subr.mxu0 0.0
        %614 = vmatpush2.msra.mxu0 0.0
        %615 = vmatprep.subr.mxu0 0.0
        %616 = vmatpush2.msra.mxu0 0.0
        %617 = vmatprep.subr.mxu0 0.0
        %618 = vmatpush2.msra.mxu0 0.0
        %619 = vmatprep.subr.mxu0 0.0
        %620 = vmatpush2.msra.mxu0 0.0
        %621 = vmatprep.subr.mxu0 0.0
        %622 = vmatpush2.msra.mxu0 0.0
        %623 = vmatprep.subr.mxu0 0.0
        %624 = vmatpush2.msra.mxu0 0.0
        %625 = vmatprep.subr.mxu0 0.0
        %626 = vmatpush2.msra.mxu0 0.0
        %627 = vmatprep.subr.mxu0 0.0
        %628 = vmatpush2.msra.mxu0 0.0
        %629 = vmatprep.subr.mxu0 0.0
        %630 = vmatpush2.msra.mxu0 0.0
        %631 = vmatprep.subr.mxu0 0.0
        %632 = vmatpush2.msra.mxu0 0.0
        %633 = vmatprep.mubr.f32.mxu0 0.0
        %634 = vmatmul.mubr.f32.gmra.mxu0 %v378
        %v635 = vpop.f32.mrf.mxu0
        %v636 = vadd.f32 0.0, %v635
        %v637 = vpop.f32.mrf.mxu0
        %638 = vmatprep.mubr.f32.mxu0 0.0
        %639 = vmatmul.mubr.f32.gmra.mxu0 %v381
        %v640 = vpop.f32.mrf.mxu0
        %v641 = vadd.f32 0.0, %v640
        %v642 = vpop.f32.mrf.mxu0
        %643 = vmatprep.mubr.f32.mxu0 0.0
        %644 = vmatmul.mubr.f32.gmra.mxu0 %v384
        %v645 = vpop.f32.mrf.mxu0
        %v646 = vadd.f32 0.0, %v645
        %v647 = vpop.f32.mrf.mxu0
        %648 = vmatprep.mubr.f32.mxu0 0.0
        %649 = vmatmul.mubr.f32.gmra.mxu0 %v387
        %v650 = vpop.f32.mrf.mxu0
        %v651 = vadd.f32 0.0, %v650
        %v652 = vpop.f32.mrf.mxu0
        %653 = vmatprep.mubr.f32.mxu0 0.0
        %654 = vmatmul.mubr.f32.gmra.mxu0 %v390
        %v655 = vpop.f32.mrf.mxu0
        %v656 = vadd.f32 0.0, %v655
        %v657 = vpop.f32.mrf.mxu0
        %658 = vmatprep.mubr.f32.mxu0 0.0
        %659 = vmatmul.mubr.f32.gmra.mxu0 %v393
        %v660 = vpop.f32.mrf.mxu0
        %v661 = vadd.f32 0.0, %v660
        %v662 = vpop.f32.mrf.mxu0
        %663 = vmatprep.mubr.f32.mxu0 0.0
        %664 = vmatmul.mubr.f32.gmra.mxu0 %v396
        %v665 = vpop.f32.mrf.mxu0
        %v666 = vadd.f32 0.0, %v665
        %v667 = vpop.f32.mrf.mxu0
        %668 = vmatprep.mubr.f32.mxu0 0.0
        %669 = vmatmul.mubr.f32.gmra.mxu0 %v399
        %v670 = vpop.f32.mrf.mxu0
        %v671 = vadd.f32 0.0, %v670
        %v672 = vpop.f32.mrf.mxu0
        %673 = vmatprep.mubr.f32.mxu0 0.0
        %674 = vmatmul.mubr.f32.gmra.mxu0 %v402
        %v675 = vpop.f32.mrf.mxu0
        %v676 = vadd.f32 0.0, %v675
        %v677 = vpop.f32.mrf.mxu0
        %678 = vmatprep.mubr.f32.mxu0 0.0
        %679 = vmatmul.mubr.f32.gmra.mxu0 %v405
        %v680 = vpop.f32.mrf.mxu0
        %v681 = vadd.f32 0.0, %v680
        %v682 = vpop.f32.mrf.mxu0
        %683 = vmatprep.mubr.f32.mxu0 0.0
        %684 = vmatmul.mubr.f32.gmra.mxu0 %v408
        %v685 = vpop.f32.mrf.mxu0
        %v686 = vadd.f32 0.0, %v685
        %v687 = vpop.f32.mrf.mxu0
        %688 = vmatprep.mubr.f32.mxu0 0.0
        %689 = vmatmul.mubr.f32.gmra.mxu0 %v411
        %v690 = vpop.f32.mrf.mxu0
        %v691 = vadd.f32 0.0, %v690
        %v692 = vpop.f32.mrf.mxu0
        %693 = vmatprep.mubr.f32.mxu0 0.0
        %694 = vmatmul.mubr.f32.gmra.mxu0 %v414
        %v695 = vpop.f32.mrf.mxu0
        %v696 = vadd.f32 0.0, %v695
        %v697 = vpop.f32.mrf.mxu0
        %698 = vmatprep.mubr.f32.mxu0 0.0
        %699 = vmatmul.mubr.f32.gmra.mxu0 %v417
        %v700 = vpop.f32.mrf.mxu0
        %v701 = vadd.f32 0.0, %v700
        %v702 = vpop.f32.mrf.mxu0
        %703 = vmatprep.mubr.f32.mxu0 0.0
        %704 = vmatmul.mubr.f32.gmra.mxu0 %v420
        %v705 = vpop.f32.mrf.mxu0
        %v706 = vadd.f32 0.0, %v705
        %v707 = vpop.f32.mrf.mxu0
        %708 = vmatprep.mubr.f32.mxu0 0.0
        %709 = vmatmul.mubr.f32.gmra.mxu0 %v423
        %v710 = vpop.f32.mrf.mxu0
        %v711 = vadd.f32 0.0, %v710
        %v712 = vpop.f32.mrf.mxu0
        %713 = vmatprep.mubr.f32.mxu0 0.0
        %714 = vmatmul.mubr.f32.gmra.mxu0 %v426
        %v715 = vpop.f32.mrf.mxu0
        %v716 = vadd.f32 0.0, %v715
        %v717 = vpop.f32.mrf.mxu0
        %718 = vmatprep.mubr.f32.mxu0 0.0
        %719 = vmatmul.mubr.f32.gmra.mxu0 %v429
        %v720 = vpop.f32.mrf.mxu0
        %v721 = vadd.f32 0.0, %v720
        %v722 = vpop.f32.mrf.mxu0
        %723 = vmatprep.mubr.f32.mxu0 0.0
        %724 = vmatmul.mubr.f32.gmra.mxu0 %v432
        %v725 = vpop.f32.mrf.mxu0
        %v726 = vadd.f32 0.0, %v725
        %v727 = vpop.f32.mrf.mxu0
        %728 = vmatprep.mubr.f32.mxu0 0.0
        %729 = vmatmul.mubr.f32.gmra.mxu0 %v435
        %v730 = vpop.f32.mrf.mxu0
        %v731 = vadd.f32 0.0, %v730
        %v732 = vpop.f32.mrf.mxu0
        %733 = vmatprep.mubr.f32.mxu0 0.0
        %734 = vmatmul.mubr.f32.gmra.mxu0 %v438
        %v735 = vpop.f32.mrf.mxu0
        %v736 = vadd.f32 0.0, %v735
        %v737 = vpop.f32.mrf.mxu0
        %738 = vmatprep.mubr.f32.mxu0 0.0
        %739 = vmatmul.mubr.f32.gmra.mxu0 %v441
        %v740 = vpop.f32.mrf.mxu0
        %v741 = vadd.f32 0.0, %v740
        %v742 = vpop.f32.mrf.mxu0
        %743 = vmatprep.mubr.f32.mxu0 0.0
        %744 = vmatmul.mubr.f32.gmra.mxu0 %v444
        %v745 = vpop.f32.mrf.mxu0
        %v746 = vadd.f32 0.0, %v745
        %v747 = vpop.f32.mrf.mxu0
        %748 = vmatprep.mubr.f32.mxu0 0.0
        %749 = vmatmul.mubr.f32.gmra.mxu0 %v447
        %v750 = vpop.f32.mrf.mxu0
        %v751 = vadd.f32 0.0, %v750
        %v752 = vpop.f32.mrf.mxu0
        %753 = vmatprep.mubr.f32.mxu0 0.0
        %754 = vmatmul.mubr.f32.gmra.mxu0 %v450
        %v755 = vpop.f32.mrf.mxu0
        %v756 = vadd.f32 0.0, %v755
        %v757 = vpop.f32.mrf.mxu0
        %758 = vmatprep.mubr.f32.mxu0 0.0
        %759 = vmatmul.mubr.f32.gmra.mxu0 %v453
        %v760 = vpop.f32.mrf.mxu0
        %v761 = vadd.f32 0.0, %v760
        %v762 = vpop.f32.mrf.mxu0
        %763 = vmatprep.mubr.f32.mxu0 0.0
        %764 = vmatmul.mubr.f32.gmra.mxu0 %v456
        %v765 = vpop.f32.mrf.mxu0
        %v766 = vadd.f32 0.0, %v765
        %v767 = vpop.f32.mrf.mxu0
        %768 = vmatprep.mubr.f32.mxu0 0.0
        %769 = vmatmul.mubr.f32.gmra.mxu0 %v459
        %v770 = vpop.f32.mrf.mxu0
        %v771 = vadd.f32 0.0, %v770
        %v772 = vpop.f32.mrf.mxu0
        %773 = vmatprep.mubr.f32.mxu0 0.0
        %774 = vmatmul.mubr.f32.gmra.mxu0 %v462
        %v775 = vpop.f32.mrf.mxu0
        %v776 = vadd.f32 0.0, %v775
        %v777 = vpop.f32.mrf.mxu0
        %778 = vmatprep.mubr.f32.mxu0 0.0
        %779 = vmatmul.mubr.f32.gmra.mxu0 %v465
        %v780 = vpop.f32.mrf.mxu0
        %v781 = vadd.f32 0.0, %v780
        %v782 = vpop.f32.mrf.mxu0
        %783 = vmatprep.mubr.f32.mxu0 0.0
        %784 = vmatmul.mubr.f32.gmra.mxu0 %v468
        %v785 = vpop.f32.mrf.mxu0
        %v786 = vadd.f32 0.0, %v785
        %v787 = vpop.f32.mrf.mxu0
        %788 = vmatprep.mubr.f32.mxu0 0.0
        %789 = vmatmul.mubr.f32.gmra.mxu0 %v471
        %v790 = vpop.f32.mrf.mxu0
        %v791 = vadd.f32 0.0, %v790
        %v792 = vpop.f32.mrf.mxu0
        %793 = vmatprep.mubr.f32.mxu0 0.0
        %794 = vmatmul.mubr.f32.gmra.mxu0 %v474
        %v795 = vpop.f32.mrf.mxu0
        %v796 = vadd.f32 0.0, %v795
        %v797 = vpop.f32.mrf.mxu0
        %798 = vmatprep.mubr.f32.mxu0 0.0
        %799 = vmatmul.mubr.f32.gmra.mxu0 %v477
        %v800 = vpop.f32.mrf.mxu0
        %v801 = vadd.f32 0.0, %v800
        %v802 = vpop.f32.mrf.mxu0
        %803 = vmatprep.mubr.f32.mxu0 0.0
        %804 = vmatmul.mubr.f32.gmra.mxu0 %v480
        %v805 = vpop.f32.mrf.mxu0
        %v806 = vadd.f32 0.0, %v805
        %v807 = vpop.f32.mrf.mxu0
        %808 = vmatprep.mubr.f32.mxu0 0.0
        %809 = vmatmul.mubr.f32.gmra.mxu0 %v483
        %v810 = vpop.f32.mrf.mxu0
        %v811 = vadd.f32 0.0, %v810
        %v812 = vpop.f32.mrf.mxu0
        %813 = vmatprep.mubr.f32.mxu0 0.0
        %814 = vmatmul.mubr.f32.gmra.mxu0 %v486
        %v815 = vpop.f32.mrf.mxu0
        %v816 = vadd.f32 0.0, %v815
        %v817 = vpop.f32.mrf.mxu0
        %818 = vmatprep.mubr.f32.mxu0 0.0
        %819 = vmatmul.mubr.f32.gmra.mxu0 %v489
        %v820 = vpop.f32.mrf.mxu0
        %v821 = vadd.f32 0.0, %v820
        %v822 = vpop.f32.mrf.mxu0
        %823 = vmatprep.mubr.f32.mxu0 0.0
        %824 = vmatmul.mubr.f32.gmra.mxu0 %v492
        %v825 = vpop.f32.mrf.mxu0
        %v826 = vadd.f32 0.0, %v825
        %v827 = vpop.f32.mrf.mxu0
        %828 = vmatprep.mubr.f32.mxu0 0.0
        %829 = vmatmul.mubr.f32.gmra.mxu0 %v495
        %v830 = vpop.f32.mrf.mxu0
        %v831 = vadd.f32 0.0, %v830
        %v832 = vpop.f32.mrf.mxu0
        %833 = vmatprep.mubr.f32.mxu0 0.0
        %834 = vmatmul.mubr.f32.gmra.mxu0 %v498
        %v835 = vpop.f32.mrf.mxu0
        %v836 = vadd.f32 0.0, %v835
        %v837 = vpop.f32.mrf.mxu0
        %838 = vmatprep.mubr.f32.mxu0 0.0
        %839 = vmatmul.mubr.f32.gmra.mxu0 %v501
        %v840 = vpop.f32.mrf.mxu0
        %v841 = vadd.f32 0.0, %v840
        %v842 = vpop.f32.mrf.mxu0
        %843 = vmatprep.mubr.f32.mxu0 0.0
        %844 = vmatmul.mubr.f32.gmra.mxu0 %v504
        %v845 = vpop.f32.mrf.mxu0
        %v846 = vadd.f32 0.0, %v845
        %v847 = vpop.f32.mrf.mxu0
        %848 = vmatprep.mubr.f32.mxu0 0.0
        %849 = vmatmul.mubr.f32.gmra.mxu0 %v507
        %v850 = vpop.f32.mrf.mxu0
        %v851 = vadd.f32 0.0, %v850
        %v852 = vpop.f32.mrf.mxu0
        %853 = vmatprep.mubr.f32.mxu0 0.0
        %854 = vmatmul.mubr.f32.gmra.mxu0 %v510
        %v855 = vpop.f32.mrf.mxu0
        %v856 = vadd.f32 0.0, %v855
        %v857 = vpop.f32.mrf.mxu0
        %858 = vmatprep.mubr.f32.mxu0 0.0
        %859 = vmatmul.mubr.f32.gmra.mxu0 %v513
        %v860 = vpop.f32.mrf.mxu0
        %v861 = vadd.f32 0.0, %v860
        %v862 = vpop.f32.mrf.mxu0
        %863 = vmatprep.mubr.f32.mxu0 0.0
        %864 = vmatmul.mubr.f32.gmra.mxu0 %v516
        %v865 = vpop.f32.mrf.mxu0
        %v866 = vadd.f32 0.0, %v865
        %v867 = vpop.f32.mrf.mxu0
        %868 = vmatprep.mubr.f32.mxu0 0.0
        %869 = vmatmul.mubr.f32.gmra.mxu0 %v519
        %v870 = vpop.f32.mrf.mxu0
        %v871 = vadd.f32 0.0, %v870
        %v872 = vpop.f32.mrf.mxu0
        %873 = vmatprep.mubr.f32.mxu0 0.0
        %874 = vmatmul.mubr.f32.gmra.mxu0 %v522
        %v875 = vpop.f32.mrf.mxu0
        %v876 = vadd.f32 0.0, %v875
        %v877 = vpop.f32.mrf.mxu0
        %878 = vmatprep.mubr.f32.mxu0 0.0
        %879 = vmatmul.mubr.f32.gmra.mxu0 %v525
        %v880 = vpop.f32.mrf.mxu0
        %v881 = vadd.f32 0.0, %v880
        %v882 = vpop.f32.mrf.mxu0
        %883 = vmatprep.mubr.f32.mxu0 0.0
        %884 = vmatmul.mubr.f32.gmra.mxu0 %v528
        %v885 = vpop.f32.mrf.mxu0
        %v886 = vadd.f32 0.0, %v885
        %v887 = vpop.f32.mrf.mxu0
        %888 = vmatprep.mubr.f32.mxu0 0.0
        %889 = vmatmul.mubr.f32.gmra.mxu0 %v531
        %v890 = vpop.f32.mrf.mxu0
        %v891 = vadd.f32 0.0, %v890
        %v892 = vpop.f32.mrf.mxu0
        %893 = vmatprep.mubr.f32.mxu0 0.0
        %894 = vmatmul.mubr.f32.gmra.mxu0 %v534
        %v895 = vpop.f32.mrf.mxu0
        %v896 = vadd.f32 0.0, %v895
        %v897 = vpop.f32.mrf.mxu0
        %898 = vmatprep.mubr.f32.mxu0 0.0
        %899 = vmatmul.mubr.f32.gmra.mxu0 %v537
        %v900 = vpop.f32.mrf.mxu0
        %v901 = vadd.f32 0.0, %v900
        %v902 = vpop.f32.mrf.mxu0
        %903 = vmatprep.mubr.f32.mxu0 0.0
        %904 = vmatmul.mubr.f32.gmra.mxu0 %v540
        %v905 = vpop.f32.mrf.mxu0
        %v906 = vadd.f32 0.0, %v905
        %v907 = vpop.f32.mrf.mxu0
        %908 = vmatprep.mubr.f32.mxu0 0.0
        %909 = vmatmul.mubr.f32.gmra.mxu0 %v543
        %v910 = vpop.f32.mrf.mxu0
        %v911 = vadd.f32 0.0, %v910
        %v912 = vpop.f32.mrf.mxu0
        %913 = vmatprep.mubr.f32.mxu0 0.0
        %914 = vmatmul.mubr.f32.gmra.mxu0 %v546
        %v915 = vpop.f32.mrf.mxu0
        %v916 = vadd.f32 0.0, %v915
        %v917 = vpop.f32.mrf.mxu0
        %918 = vmatprep.mubr.f32.mxu0 0.0
        %919 = vmatmul.mubr.f32.gmra.mxu0 %v549
        %v920 = vpop.f32.mrf.mxu0
        %v921 = vadd.f32 0.0, %v920
        %v922 = vpop.f32.mrf.mxu0
        %923 = vmatprep.mubr.f32.mxu0 0.0
        %924 = vmatmul.mubr.f32.gmra.mxu0 %v552
        %v925 = vpop.f32.mrf.mxu0
        %v926 = vadd.f32 0.0, %v925
        %v927 = vpop.f32.mrf.mxu0
        %928 = vmatprep.mubr.f32.mxu0 0.0
        %929 = vmatmul.mubr.f32.gmra.mxu0 %v555
        %v930 = vpop.f32.mrf.mxu0
        %v931 = vadd.f32 0.0, %v930
        %v932 = vpop.f32.mrf.mxu0
        %933 = vmatprep.mubr.f32.mxu0 0.0
        %934 = vmatmul.mubr.f32.gmra.mxu0 %v558
        %v935 = vpop.f32.mrf.mxu0
        %v936 = vadd.f32 0.0, %v935
        %v937 = vpop.f32.mrf.mxu0
        %938 = vmatprep.mubr.f32.mxu0 0.0
        %939 = vmatmul.mubr.f32.gmra.mxu0 %v561
        %v940 = vpop.f32.mrf.mxu0
        %v941 = vadd.f32 0.0, %v940
        %v942 = vpop.f32.mrf.mxu0
        %943 = vmatprep.mubr.f32.mxu0 0.0
        %944 = vmatmul.mubr.f32.gmra.mxu0 %v564
        %v945 = vpop.f32.mrf.mxu0
        %v946 = vadd.f32 0.0, %v945
        %v947 = vpop.f32.mrf.mxu0
        %948 = vmatprep.mubr.f32.mxu0 0.0
        %949 = vmatmul.mubr.f32.gmra.mxu0 %v567
        %v950 = vpop.f32.mrf.mxu0
        %v951 = vadd.f32 0.0, %v950
        %v952 = vpop.f32.mrf.mxu0
        %953 = vdwg.mxu0
        %v954 = vmax.f32 %v636, 0.0
        %v955 = vmax.f32 %v641, 0.0
        %v956 = vmax.f32 %v646, 0.0
        %v957 = vmax.f32 %v651, 0.0
        %v958 = vmax.f32 %v656, 0.0
        %v959 = vmax.f32 %v661, 0.0
        %v960 = vmax.f32 %v666, 0.0
        %v961 = vmax.f32 %v671, 0.0
        %v962 = vmax.f32 %v676, 0.0
        %v963 = vmax.f32 %v681, 0.0
        %v964 = vmax.f32 %v686, 0.0
        %v965 = vmax.f32 %v691, 0.0
        %v966 = vmax.f32 %v696, 0.0
        %v967 = vmax.f32 %v701, 0.0
        %v968 = vmax.f32 %v706, 0.0
        %v969 = vmax.f32 %v711, 0.0
        %v970 = vmax.f32 %v716, 0.0
        %v971 = vmax.f32 %v721, 0.0
        %v972 = vmax.f32 %v726, 0.0
        %v973 = vmax.f32 %v731, 0.0
        %v974 = vmax.f32 %v736, 0.0
        %v975 = vmax.f32 %v741, 0.0
        %v976 = vmax.f32 %v746, 0.0
        %v977 = vmax.f32 %v751, 0.0
        %v978 = vmax.f32 %v756, 0.0
        %v979 = vmax.f32 %v761, 0.0
        %v980 = vmax.f32 %v766, 0.0
        %v981 = vmax.f32 %v771, 0.0
        %v982 = vmax.f32 %v776, 0.0
        %v983 = vmax.f32 %v781, 0.0
        %v984 = vmax.f32 %v786, 0.0
        %v985 = vmax.f32 %v791, 0.0
        %v986 = vmax.f32 %v796, 0.0
        %v987 = vmax.f32 %v801, 0.0
        %v988 = vmax.f32 %v806, 0.0
        %v989 = vmax.f32 %v811, 0.0
        %v990 = vmax.f32 %v816, 0.0
        %v991 = vmax.f32 %v821, 0.0
        %v992 = vmax.f32 %v826, 0.0
        %v993 = vmax.f32 %v831, 0.0
        %v994 = vmax.f32 %v836, 0.0
        %v995 = vmax.f32 %v841, 0.0
        %v996 = vmax.f32 %v846, 0.0
        %v997 = vmax.f32 %v851, 0.0
        %v998 = vmax.f32 %v856, 0.0
        %v999 = vmax.f32 %v861, 0.0
        %v1000 = vmax.f32 %v866, 0.0
        %v1001 = vmax.f32 %v871, 0.0
        %v1002 = vmax.f32 %v876, 0.0
        %v1003 = vmax.f32 %v881, 0.0
        %v1004 = vmax.f32 %v886, 0.0
        %v1005 = vmax.f32 %v891, 0.0
        %v1006 = vmax.f32 %v896, 0.0
        %v1007 = vmax.f32 %v901, 0.0
        %v1008 = vmax.f32 %v906, 0.0
        %v1009 = vmax.f32 %v911, 0.0
        %v1010 = vmax.f32 %v916, 0.0
        %v1011 = vmax.f32 %v921, 0.0
        %v1012 = vmax.f32 %v926, 0.0
        %v1013 = vmax.f32 %v931, 0.0
        %v1014 = vmax.f32 %v936, 0.0
        %v1015 = vmax.f32 %v941, 0.0
        %v1016 = vmax.f32 %v946, 0.0
        %v1017 = vmax.f32 %v951, 0.0
        %v1018 = vld [vmem:[%s3] sm:$0xff]
        %v1019 = vld [vmem:[%s3 + $0x8] sm:$0xff]
        %v1020 = vld [vmem:[%s3 + $0x10] sm:$0xff]
        %v1021 = vld [vmem:[%s3 + $0x18] sm:$0xff]
        %1022 = vmatprep.subr.mxu0 0.0
        %1023 = vmatpush1.msra.mxu0 %v969
        %1024 = vmatprep.subr.mxu0 0.0
        %1025 = vmatpush1.msra.mxu0 %v968
        %1026 = vmatprep.subr.mxu0 0.0
        %1027 = vmatpush1.msra.mxu0 %v967
        %1028 = vmatprep.subr.mxu0 0.0
        %1029 = vmatpush1.msra.mxu0 %v966
        %1030 = vmatprep.subr.mxu0 0.0
        %1031 = vmatpush1.msra.mxu0 %v965
        %1032 = vmatprep.subr.mxu0 0.0
        %1033 = vmatpush1.msra.mxu0 %v964
        %1034 = vmatprep.subr.mxu0 0.0
        %1035 = vmatpush1.msra.mxu0 %v963
        %1036 = vmatprep.subr.mxu0 0.0
        %1037 = vmatpush1.msra.mxu0 %v962
        %1038 = vmatprep.subr.mxu0 0.0
        %1039 = vmatpush1.msra.mxu0 %v961
        %1040 = vmatprep.subr.mxu0 0.0
        %1041 = vmatpush1.msra.mxu0 %v960
        %1042 = vmatprep.subr.mxu0 0.0
        %1043 = vmatpush1.msra.mxu0 %v959
        %1044 = vmatprep.subr.mxu0 0.0
        %1045 = vmatpush1.msra.mxu0 %v958
        %1046 = vmatprep.subr.mxu0 0.0
        %1047 = vmatpush1.msra.mxu0 %v957
        %1048 = vmatprep.subr.mxu0 0.0
        %1049 = vmatpush1.msra.mxu0 %v956
        %1050 = vmatprep.subr.mxu0 0.0
        %1051 = vmatpush1.msra.mxu0 %v955
        %1052 = vmatprep.subr.mxu0 0.0
        %1053 = vmatpush1.msra.mxu0 %v954
        %1054 = vmatprep.subr.mxu0 0.0
        %1055 = vmatpush2.msra.mxu0 %v985
        %1056 = vmatprep.subr.mxu0 0.0
        %1057 = vmatpush2.msra.mxu0 %v984
        %1058 = vmatprep.subr.mxu0 0.0
        %1059 = vmatpush2.msra.mxu0 %v983
        %1060 = vmatprep.subr.mxu0 0.0
        %1061 = vmatpush2.msra.mxu0 %v982
        %1062 = vmatprep.subr.mxu0 0.0
        %1063 = vmatpush2.msra.mxu0 %v981
        %1064 = vmatprep.subr.mxu0 0.0
        %1065 = vmatpush2.msra.mxu0 %v980
        %1066 = vmatprep.subr.mxu0 0.0
        %1067 = vmatpush2.msra.mxu0 %v979
        %1068 = vmatprep.subr.mxu0 0.0
        %1069 = vmatpush2.msra.mxu0 %v978
        %1070 = vmatprep.subr.mxu0 0.0
        %1071 = vmatpush2.msra.mxu0 %v977
        %1072 = vmatprep.subr.mxu0 0.0
        %1073 = vmatpush2.msra.mxu0 %v976
        %1074 = vmatprep.subr.mxu0 0.0
        %1075 = vmatpush2.msra.mxu0 %v975
        %1076 = vmatprep.subr.mxu0 0.0
        %1077 = vmatpush2.msra.mxu0 %v974
        %1078 = vmatprep.subr.mxu0 0.0
        %1079 = vmatpush2.msra.mxu0 %v973
        %1080 = vmatprep.subr.mxu0 0.0
        %1081 = vmatpush2.msra.mxu0 %v972
        %1082 = vmatprep.subr.mxu0 0.0
        %1083 = vmatpush2.msra.mxu0 %v971
        %1084 = vmatprep.subr.mxu0 0.0
        %1085 = vmatpush2.msra.mxu0 %v970
        %1086 = vmatprep.mubr.f32.mxu0 %v1019
        %1087 = vmatmul.mubr.f32.gmra.mxu0 %v1018
        %v1088 = vpop.f32.mrf.mxu0
        %v1089 = vadd.f32 0.0, %v1088
        %v1090 = vpop.f32.mrf.mxu0
        %1091 = vdwg.mxu0
        %1092 = vmatprep.subr.mxu0 0.0
        %1093 = vmatpush1.msra.mxu0 %v1001
        %1094 = vmatprep.subr.mxu0 0.0
        %1095 = vmatpush1.msra.mxu0 %v1000
        %1096 = vmatprep.subr.mxu0 0.0
        %1097 = vmatpush1.msra.mxu0 %v999
        %1098 = vmatprep.subr.mxu0 0.0
        %1099 = vmatpush1.msra.mxu0 %v998
        %1100 = vmatprep.subr.mxu0 0.0
        %1101 = vmatpush1.msra.mxu0 %v997
        %1102 = vmatprep.subr.mxu0 0.0
        %1103 = vmatpush1.msra.mxu0 %v996
        %1104 = vmatprep.subr.mxu0 0.0
        %1105 = vmatpush1.msra.mxu0 %v995
        %1106 = vmatprep.subr.mxu0 0.0
        %1107 = vmatpush1.msra.mxu0 %v994
        %1108 = vmatprep.subr.mxu0 0.0
        %1109 = vmatpush1.msra.mxu0 %v993
        %1110 = vmatprep.subr.mxu0 0.0
        %1111 = vmatpush1.msra.mxu0 %v992
        %1112 = vmatprep.subr.mxu0 0.0
        %1113 = vmatpush1.msra.mxu0 %v991
        %1114 = vmatprep.subr.mxu0 0.0
        %1115 = vmatpush1.msra.mxu0 %v990
        %1116 = vmatprep.subr.mxu0 0.0
        %1117 = vmatpush1.msra.mxu0 %v989
        %1118 = vmatprep.subr.mxu0 0.0
        %1119 = vmatpush1.msra.mxu0 %v988
        %1120 = vmatprep.subr.mxu0 0.0
        %1121 = vmatpush1.msra.mxu0 %v987
        %1122 = vmatprep.subr.mxu0 0.0
        %1123 = vmatpush1.msra.mxu0 %v986
        %1124 = vmatprep.subr.mxu0 0.0
        %1125 = vmatpush2.msra.mxu0 %v1017
        %1126 = vmatprep.subr.mxu0 0.0
        %1127 = vmatpush2.msra.mxu0 %v1016
        %1128 = vmatprep.subr.mxu0 0.0
        %1129 = vmatpush2.msra.mxu0 %v1015
        %1130 = vmatprep.subr.mxu0 0.0
        %1131 = vmatpush2.msra.mxu0 %v1014
        %1132 = vmatprep.subr.mxu0 0.0
        %1133 = vmatpush2.msra.mxu0 %v1013
        %1134 = vmatprep.subr.mxu0 0.0
        %1135 = vmatpush2.msra.mxu0 %v1012
        %1136 = vmatprep.subr.mxu0 0.0
        %1137 = vmatpush2.msra.mxu0 %v1011
        %1138 = vmatprep.subr.mxu0 0.0
        %1139 = vmatpush2.msra.mxu0 %v1010
        %1140 = vmatprep.subr.mxu0 0.0
        %1141 = vmatpush2.msra.mxu0 %v1009
        %1142 = vmatprep.subr.mxu0 0.0
        %1143 = vmatpush2.msra.mxu0 %v1008
        %1144 = vmatprep.subr.mxu0 0.0
        %1145 = vmatpush2.msra.mxu0 %v1007
        %1146 = vmatprep.subr.mxu0 0.0
        %1147 = vmatpush2.msra.mxu0 %v1006
        %1148 = vmatprep.subr.mxu0 0.0
        %1149 = vmatpush2.msra.mxu0 %v1005
        %1150 = vmatprep.subr.mxu0 0.0
        %1151 = vmatpush2.msra.mxu0 %v1004
        %1152 = vmatprep.subr.mxu0 0.0
        %1153 = vmatpush2.msra.mxu0 %v1003
        %1154 = vmatprep.subr.mxu0 0.0
        %1155 = vmatpush2.msra.mxu0 %v1002
        %1156 = vmatprep.mubr.f32.mxu0 %v1021
        %1157 = vmatmul.mubr.f32.gmra.mxu0 %v1020
        %v1158 = vpop.f32.mrf.mxu0
        %v1159 = vadd.f32 %v1089, %v1158
        %v1160 = vpop.f32.mrf.mxu0
        %1161 = vdwg.mxu0
        %v1162 = vld [vmem:[%s300] sm:$0xff]
        %v1163 = vld [vmem:[%s300 + $0x8] sm:$0xff]
        %v1164 = vld [vmem:[%s300 + $0x10] sm:$0xff]
        %v1165 = vld [vmem:[%s300 + $0x18] sm:$0xff]
        %v1166 = vld [vmem:[%s300 + $0x20] sm:$0xff]
        %v1167 = vld [vmem:[%s300 + $0x28] sm:$0xff]
        %v1168 = vld [vmem:[%s300 + $0x30] sm:$0xff]
        %v1169 = vld [vmem:[%s300 + $0x38] sm:$0xff]
        %v1170 = vld [vmem:[%s300 + $0x40] sm:$0xff]
        %v1171 = vld [vmem:[%s300 + $0x48] sm:$0xff]
        %v1172 = vld [vmem:[%s300 + $0x50] sm:$0xff]
        %v1173 = vld [vmem:[%s300 + $0x58] sm:$0xff]
        %v1174 = vld [vmem:[%s300 + $0x60] sm:$0xff]
        %v1175 = vld [vmem:[%s300 + $0x68] sm:$0xff]
        %v1176 = vld [vmem:[%s300 + $0x70] sm:$0xff]
        %v1177 = vld [vmem:[%s300 + $0x78] sm:$0xff]
        %v1178 = vld [vmem:[%s306] sm:$0xf]
        %v1180 = vlaneseq
        %v1181 = vshrl.u32 %v1180, 7
        %v1182 = vsub.s32 0, %v1181
        %v1183 = vrot.slane %v1178, %v1182
        %v1184 = vlaneseq
        %v1185 = vshrl.u32 %v1184, 7
        %v1186 = vsub.s32 1, %v1185
        %v1187 = vrot.slane %v1178, %v1186
        %v1188 = vlaneseq
        %v1189 = vshrl.u32 %v1188, 7
        %v1190 = vsub.s32 2, %v1189
        %v1191 = vrot.slane %v1178, %v1190
        %v1192 = vlaneseq
        %v1193 = vshrl.u32 %v1192, 7
        %v1194 = vsub.s32 3, %v1193
        %v1195 = vrot.slane %v1178, %v1194
        %v1201 = vsel %vm376, %v1159, 0
        %1203 = vmatprep.subr.mxu0 0.0
        %1204 = vmatpush1.msra.mxu0 0.0
        %1205 = vmatprep.subr.mxu0 0.0
        %1206 = vmatpush1.msra.mxu0 0.0
        %1207 = vmatprep.subr.mxu0 0.0
        %1208 = vmatpush1.msra.mxu0 0.0
        %1209 = vmatprep.subr.mxu0 0.0
        %1210 = vmatpush1.msra.mxu0 0.0
        %1211 = vmatprep.subr.mxu0 0.0
        %1212 = vmatpush1.msra.mxu0 0.0
        %1213 = vmatprep.subr.mxu0 0.0
        %1214 = vmatpush1.msra.mxu0 0.0
        %1215 = vmatprep.subr.mxu0 0.0
        %1216 = vmatpush1.msra.mxu0 0.0
        %1217 = vmatprep.subr.mxu0 0.0
        %1218 = vmatpush1.msra.mxu0 0.0
        %1219 = vmatprep.subr.mxu0 0.0
        %1220 = vmatpush1.msra.mxu0 0.0
        %1221 = vmatprep.subr.mxu0 0.0
        %1222 = vmatpush1.msra.mxu0 0.0
        %1223 = vmatprep.subr.mxu0 0.0
        %1224 = vmatpush1.msra.mxu0 0.0
        %1225 = vmatprep.subr.mxu0 0.0
        %1226 = vmatpush1.msra.mxu0 0.0
        %1227 = vmatprep.subr.mxu0 %v1175
        %1228 = vmatpush1.msra.mxu0 %v1174
        %1229 = vmatprep.subr.mxu0 %v1171
        %1230 = vmatpush1.msra.mxu0 %v1170
        %1231 = vmatprep.subr.mxu0 %v1167
        %1232 = vmatpush1.msra.mxu0 %v1166
        %1233 = vmatprep.subr.mxu0 %v1163
        %1234 = vmatpush1.msra.mxu0 %v1162
        %1235 = vmatprep.subr.mxu0 0.0
        %1236 = vmatpush2.msra.mxu0 0.0
        %1237 = vmatprep.subr.mxu0 0.0
        %1238 = vmatpush2.msra.mxu0 0.0
        %1239 = vmatprep.subr.mxu0 0.0
        %1240 = vmatpush2.msra.mxu0 0.0
        %1241 = vmatprep.subr.mxu0 0.0
        %1242 = vmatpush2.msra.mxu0 0.0
        %1243 = vmatprep.subr.mxu0 0.0
        %1244 = vmatpush2.msra.mxu0 0.0
        %1245 = vmatprep.subr.mxu0 0.0
        %1246 = vmatpush2.msra.mxu0 0.0
        %1247 = vmatprep.subr.mxu0 0.0
        %1248 = vmatpush2.msra.mxu0 0.0
        %1249 = vmatprep.subr.mxu0 0.0
        %1250 = vmatpush2.msra.mxu0 0.0
        %1251 = vmatprep.subr.mxu0 0.0
        %1252 = vmatpush2.msra.mxu0 0.0
        %1253 = vmatprep.subr.mxu0 0.0
        %1254 = vmatpush2.msra.mxu0 0.0
        %1255 = vmatprep.subr.mxu0 0.0
        %1256 = vmatpush2.msra.mxu0 0.0
        %1257 = vmatprep.subr.mxu0 0.0
        %1258 = vmatpush2.msra.mxu0 0.0
        %1259 = vmatprep.subr.mxu0 0.0
        %1260 = vmatpush2.msra.mxu0 0.0
        %1261 = vmatprep.subr.mxu0 0.0
        %1262 = vmatpush2.msra.mxu0 0.0
        %1263 = vmatprep.subr.mxu0 0.0
        %1264 = vmatpush2.msra.mxu0 0.0
        %1265 = vmatprep.subr.mxu0 0.0
        %1266 = vmatpush2.msra.mxu0 0.0
        %1267 = vmatprep.mubr.f32.mxu0 0.0
        %1268 = vmatmul.mubr.f32.gmra.mxu0 %v1201
        %v1269 = vpop.f32.mrf.mxu0
        %v1270 = vadd.f32 %v1183, %v1269
        %v1271 = vpop.f32.mrf.mxu0
        %v1272 = vadd.f32 %v1187, %v1271
        %1273 = vdwg.mxu0
        %1274 = vmatprep.subr.mxu0 0.0
        %1275 = vmatpush1.msra.mxu0 0.0
        %1276 = vmatprep.subr.mxu0 0.0
        %1277 = vmatpush1.msra.mxu0 0.0
        %1278 = vmatprep.subr.mxu0 0.0
        %1279 = vmatpush1.msra.mxu0 0.0
        %1280 = vmatprep.subr.mxu0 0.0
        %1281 = vmatpush1.msra.mxu0 0.0
        %1282 = vmatprep.subr.mxu0 0.0
        %1283 = vmatpush1.msra.mxu0 0.0
        %1284 = vmatprep.subr.mxu0 0.0
        %1285 = vmatpush1.msra.mxu0 0.0
        %1286 = vmatprep.subr.mxu0 0.0
        %1287 = vmatpush1.msra.mxu0 0.0
        %1288 = vmatprep.subr.mxu0 0.0
        %1289 = vmatpush1.msra.mxu0 0.0
        %1290 = vmatprep.subr.mxu0 0.0
        %1291 = vmatpush1.msra.mxu0 0.0
        %1292 = vmatprep.subr.mxu0 0.0
        %1293 = vmatpush1.msra.mxu0 0.0
        %1294 = vmatprep.subr.mxu0 0.0
        %1295 = vmatpush1.msra.mxu0 0.0
        %1296 = vmatprep.subr.mxu0 0.0
        %1297 = vmatpush1.msra.mxu0 0.0
        %1298 = vmatprep.subr.mxu0 %v1177
        %1299 = vmatpush1.msra.mxu0 %v1176
        %1300 = vmatprep.subr.mxu0 %v1173
        %1301 = vmatpush1.msra.mxu0 %v1172
        %1302 = vmatprep.subr.mxu0 %v1169
        %1303 = vmatpush1.msra.mxu0 %v1168
        %1304 = vmatprep.subr.mxu0 %v1165
        %1305 = vmatpush1.msra.mxu0 %v1164
        %1306 = vmatprep.subr.mxu0 0.0
        %1307 = vmatpush2.msra.mxu0 0.0
        %1308 = vmatprep.subr.mxu0 0.0
        %1309 = vmatpush2.msra.mxu0 0.0
        %1310 = vmatprep.subr.mxu0 0.0
        %1311 = vmatpush2.msra.mxu0 0.0
        %1312 = vmatprep.subr.mxu0 0.0
        %1313 = vmatpush2.msra.mxu0 0.0
        %1314 = vmatprep.subr.mxu0 0.0
        %1315 = vmatpush2.msra.mxu0 0.0
        %1316 = vmatprep.subr.mxu0 0.0
        %1317 = vmatpush2.msra.mxu0 0.0
        %1318 = vmatprep.subr.mxu0 0.0
        %1319 = vmatpush2.msra.mxu0 0.0
        %1320 = vmatprep.subr.mxu0 0.0
        %1321 = vmatpush2.msra.mxu0 0.0
        %1322 = vmatprep.subr.mxu0 0.0
        %1323 = vmatpush2.msra.mxu0 0.0
        %1324 = vmatprep.subr.mxu0 0.0
        %1325 = vmatpush2.msra.mxu0 0.0
        %1326 = vmatprep.subr.mxu0 0.0
        %1327 = vmatpush2.msra.mxu0 0.0
        %1328 = vmatprep.subr.mxu0 0.0
        %1329 = vmatpush2.msra.mxu0 0.0
        %1330 = vmatprep.subr.mxu0 0.0
        %1331 = vmatpush2.msra.mxu0 0.0
        %1332 = vmatprep.subr.mxu0 0.0
        %1333 = vmatpush2.msra.mxu0 0.0
        %1334 = vmatprep.subr.mxu0 0.0
        %1335 = vmatpush2.msra.mxu0 0.0
        %1336 = vmatprep.subr.mxu0 0.0
        %1337 = vmatpush2.msra.mxu0 0.0
        %1338 = vmatprep.mubr.f32.mxu0 0.0
        %1339 = vmatmul.mubr.f32.gmra.mxu0 %v1201
        %v1340 = vpop.f32.mrf.mxu0
        %v1341 = vadd.f32 %v1191, %v1340
        %v1342 = vpop.f32.mrf.mxu0
        %v1343 = vadd.f32 %v1195, %v1342
        %1344 = vdwg.mxu0
        %1345 = vst [vmem:[%s282] sm:$0xff] %v1270
        %1346 = vst [vmem:[%s282 + $0x8] sm:$0xff] %v1272
        %1347 = vst [vmem:[%s282 + $0x10] sm:$0xff] %v1341
        %1348 = vst [vmem:[%s282 + $0x18] sm:$0xff] %v1343
        %s1349 = sand.u32 %s165, 1
        %s1350 = scalar_lea.sflag [#allocation5], %s1349
        %s1351 = sand.u32 %s165, 1
        %s1352 = smul.addr %s1351, 32
        %s1353 = scalar_lea.vmem [#allocation4], %s1352
        // Predicated region
        $region41: #{tpu_custom_call.1} parent=39 // pred_check
          %p1354 = pneg %p175
        $region42: #{tpu_custom_call.1} parent=39 // pred_check_branch
          %1356 = sbr.rel (%p1354) target = $region44
        $region43: #{tpu_custom_call.1} parent=39 // pred_region
          %s1358 = ssub.s32 512, 512
          %1359 = vsyncadd %s1350, %s1358
          %s1360 = smul.addr %s26, 4
          %s1361 = smul.addr %s1360, 128
          %s1362 = scalar_lea.hbm %s6, %s1361
          %s1364 = sshll.u32 %s1353, 4
          %s1365 = int_to_ptr.vmem [resolvable:$true] %s1364
          %1367 = dma.vmem_to_hbm [thread:$0]  %s1365, 512, %s1362, %s1350
        $region44: #{tpu_custom_call.1} parent=39 // pred_fallthru
          _
      $region40: #{tpu_custom_call.1} parent=5 // pred_fallthru
        _
      %p1368 = scmp.le.s32.totalorder 2, %s21
      // Predicated region
      $region45: #{tpu_custom_call.1} parent=5 // pred_check
        %p1369 = pneg %p1368
      $region46: #{tpu_custom_call.1} parent=5 // pred_check_branch
        %1371 = sbr.rel (%p1369) target = $region48
      $region47: #{tpu_custom_call.1} parent=5 // pred_region
        %s1372 = ssub.s32 %s21, 2
        // Predicated region
        $region49: #{tpu_custom_call.1} parent=47 // pred_check
          %p1373 = pneg %p181
        $region50: #{tpu_custom_call.1} parent=47 // pred_check_branch
          %1375 = sbr.rel (%p1373) target = $region52
        $region51: #{tpu_custom_call.1} parent=47 // pred_region
          %s1376 = sand.u32 %s166, 1
          %s1377 = scalar_lea.sflag [#allocation5], %s1376
          %s1378 = sand.u32 %s166, 1
          %s1379 = smul.addr %s1378, 32
          %s1380 = scalar_lea.vmem [#allocation4], %s1379
          %1381 = dma.done %s1377, 512
        $region52: #{tpu_custom_call.1} parent=47 // pred_fallthru
          _
      $region48: #{tpu_custom_call.1} parent=5 // pred_fallthru
        _
    $region6: #{tpu_custom_call.1} parent=1 // loop_footer
      %s25 = sadd.s32 1, %s21
    $region7: #{tpu_custom_call.1} parent=1 // loop_footer_branch
      %20 = sbr.rel target = $region3
    $region8: #{tpu_custom_call.1} parent=1 // loop_exit
      _
    %1382 = vsyncpa [#allocation5], 1
    %s1383 = scalar_lea.sflag [#allocation5], 1
    %1384 = vsyncpa %s1383, 1

</llo_original>
